<compile_context>
chip_gen: v5e
topology: v5e:2x2
jax: 0.10.0
libtpu: 0.0.40
codegen_flags: <defaults>
</compile_context>

<pallas_src>
import math

import jax
import jax.numpy as jnp
from jax.experimental import pallas as pl
from jax.experimental.pallas import tpu as pltpu


def _sinusoidal_kernel(x_ref, tab_ref, o_ref):
    # x_ref:   (Bb, 1)   timesteps (column)
    # tab_ref: (2, dim)  row 0: frequencies duplicated over both halves
    #                    row 1: phase offset (0.0 for sin half, pi/2 for cos half)
    # o_ref:   (Bb, dim)
    tab = tab_ref[...]                      # (2, dim)
    freq = tab[0:1, :]                      # (1, dim)
    phase = tab[1:2, :]                     # (1, dim)
    # Single lane-dense store; one sin chain instead of sin+cos+select.
    o_ref[...] = jnp.sin(x_ref[...] * freq + phase)


# Per-dim cache of the (2, dim) constant table (freq row + phase row).
_TABLE_CACHE = {}


def _const_table(dim):
    tab = _TABLE_CACHE.get(dim)
    if tab is None:
        half = dim // 2
        c = math.log(10000.0) / (half - 1)
        freqs = jnp.exp(jnp.arange(half, dtype=jnp.float32) * -c)       # (half,)
        freq_row = jnp.concatenate([freqs, freqs])                      # (dim,)
        phase_row = jnp.concatenate([
            jnp.zeros((half,), jnp.float32),
            jnp.full((half,), jnp.float32(math.pi / 2.0)),
        ])                                                               # (dim,)
        tab = jnp.stack([freq_row, phase_row], axis=0)                   # (2, dim)
        _TABLE_CACHE[dim] = tab
    return tab


def _pick_batch_tile(B):
    """Whole batch for small B; for large B keep >=2 grid steps (v7x megacore),
    rows a multiple of 8, and buffers comfortably under scoped VMEM."""
    if B <= 1024:
        return B
    half_rounded = ((pl.cdiv(B, 2) + 7) // 8) * 8
    return min(2048, half_rounded)


def sinusoidal_pos_emb(x, dim):
    """x: (B,) float timesteps. Returns (B, dim) float32 embedding."""
    assert dim % 2 == 0 and dim >= 4
    B = x.shape[0]

    tab = _const_table(dim)                                   # (2, dim) cached
    x2d = x.astype(jnp.float32).reshape(B, 1)                 # (B, 1)

    Bb = _pick_batch_tile(B)
    grid = (pl.cdiv(B, Bb),)

    cost = pl.CostEstimate(
        flops=2 * B * dim,                 # broadcast multiply + phase add
        transcendentals=B * dim,           # single sin over the output tile
        bytes_accessed=4 * (B + 2 * dim + B * dim),
    )

    out = pl.pallas_call(
        _sinusoidal_kernel,
        out_shape=jax.ShapeDtypeStruct((B, dim), jnp.float32),
        grid_spec=pltpu.PrefetchScalarGridSpec(
            num_scalar_prefetch=0,
            grid=grid,
            in_specs=[
                pl.BlockSpec((Bb, 1), lambda i: (i, 0)),      # timesteps column
                pl.BlockSpec((2, dim), lambda i: (0, 0)),     # freq + phase table
            ],
            out_specs=pl.BlockSpec((Bb, dim), lambda i: (i, 0)),
        ),
        compiler_params=pltpu.CompilerParams(
            dimension_semantics=("parallel",)),
        cost_estimate=cost,
    )(x2d, tab)
    return out


def _reference(x, dim):
    """Pure-JAX reference matching the PyTorch forward."""
    half = dim // 2
    c = math.log(10000.0) / (half - 1)
    freqs = jnp.exp(jnp.arange(half, dtype=jnp.float32) * -c)
    emb = x.astype(jnp.float32)[:, None] * freqs[None, :]
    return jnp.concatenate([jnp.sin(emb), jnp.cos(emb)], axis=-1)


if __name__ == "__main__":
    B, dim = 8, 128
    key = jax.random.PRNGKey(0)
    # Diffusion-style timesteps.
    x = jax.random.uniform(key, (B,), dtype=jnp.float32, minval=0.0, maxval=100.0)

    out = sinusoidal_pos_emb(x, dim)
    out = jax.block_until_ready(out)

    ref = _reference(x, dim)
    assert out.shape == (B, dim)
    max_err = jnp.max(jnp.abs(out - ref))
    assert jnp.allclose(out, ref, atol=1e-4, rtol=1e-4), f"max abs err {max_err}"
    print("KERNEL_OK")
</pallas_src>

<mosaic_0001>
module attributes {stable_mosaic.version = 11 : i64} {
  func.func @_sinusoidal_kernel(%arg0: i32, %arg1: memref<8x1xf32, #tpu.memory_space<vmem>>, %arg2: memref<2x128xf32, #tpu.memory_space<vmem>>, %arg3: memref<8x128xf32, #tpu.memory_space<vmem>>) attributes {dimension_semantics = [#tpu.dimension_semantics<parallel>], iteration_bounds = array<i64: 1>, scalar_prefetch = 0 : i64, scratch_operands = 0 : i64, tpu.core_type = #tpu.core_type<tc>, window_params = [{transform_indices = @transform_0, window_bounds = array<i64: 8, 1>}, {pipeline_mode = #tpu.pipeline_mode<synchronous>, transform_indices = @transform_1, window_bounds = array<i64: 2, 128>}, {transform_indices = @transform_2, window_bounds = array<i64: 8, 128>}]} {
    %c0 = arith.constant 0 : index
    %c0_0 = arith.constant 0 : index
    %0 = vector.load %arg2[%c0, %c0_0] : memref<2x128xf32, #tpu.memory_space<vmem>>, vector<2x128xf32>
    %1 = vector.extract_strided_slice %0 {offsets = [0, 0], sizes = [1, 128], strides = [1, 1]} : vector<2x128xf32> to vector<1x128xf32>
    %2 = vector.extract_strided_slice %0 {offsets = [1, 0], sizes = [1, 128], strides = [1, 1]} : vector<2x128xf32> to vector<1x128xf32>
    %c0_1 = arith.constant 0 : index
    %c0_2 = arith.constant 0 : index
    %3 = vector.load %arg1[%c0_1, %c0_2] : memref<8x1xf32, #tpu.memory_space<vmem>>, vector<8x1xf32>
    %4 = vector.broadcast %3 : vector<8x1xf32> to vector<8x128xf32>
    %5 = vector.broadcast %1 : vector<1x128xf32> to vector<8x128xf32>
    %6 = arith.mulf %4, %5 : vector<8x128xf32>
    %7 = vector.broadcast %2 : vector<1x128xf32> to vector<8x128xf32>
    %8 = arith.addf %6, %7 : vector<8x128xf32>
    %9 = math.sin %8 : vector<8x128xf32>
    %c0_3 = arith.constant 0 : index
    %c0_4 = arith.constant 0 : index
    %10 = vector.load %arg3[%c0_3, %c0_4] : memref<8x128xf32, #tpu.memory_space<vmem>>, vector<8x128xf32>
    tpu.vector_store %arg3[%c0_3, %c0_4], %9 {strides = array<i32>} : memref<8x128xf32, #tpu.memory_space<vmem>>, vector<8x128xf32>,
    return
  }
  func.func @transform_0(%arg0: i32) -> (i32, i32) {
    %c0_i32 = arith.constant 0 : i32
    %c0_i32_0 = arith.constant 0 : i32
    return %arg0, %c0_i32 : i32, i32
  }
  func.func @transform_1(%arg0: i32) -> (i32, i32) {
    %c0_i32 = arith.constant 0 : i32
    %c0_i32_0 = arith.constant 0 : i32
    %c0_i32_1 = arith.constant 0 : i32
    return %c0_i32, %c0_i32_0 : i32, i32
  }
  func.func @transform_2(%arg0: i32) -> (i32, i32) {
    %c0_i32 = arith.constant 0 : i32
    %c0_i32_0 = arith.constant 0 : i32
    return %arg0, %c0_i32 : i32, i32
  }
}

</mosaic_0001>

<llo_original>
// kernel: tpu_custom_call.1
$region0: #{tpu_custom_call.1}
  #allocation0 [shape = 'u32[]', space=smem, size = 0x4, offset = 0x4, fixed_abs, tag = 'smem constant byte address 0x4 - core index']
  #allocation1 [shape = 'u32[72,128]{1,0:T(1,128)}', space=vmem, size = 0x9000, scoped, tag = 'internal scratch']
  %s0 = inlined_call_operand.vmem [shape: f32[8,1], index: 0, kind: input, shape index: {}]
  %s1 = inlined_call_operand.vmem [shape: f32[2,128], index: 1, kind: input, shape index: {}]
  %s2 = inlined_call_operand.hbm [shape: f32[8,128], index: 2, kind: output, shape index: {}]
  %s3 = sld [smem:[#allocation0]]
  $region18: #{tpu_custom_call.1} parent=0
    _
  %s5 = ssub.s32 1, %s3
  %s6 = scalar_select 0, %s5, %s3
  $region1: #{tpu_custom_call.1} parent=0
    #allocation2 [shape = 'u8[4096]{0}', space=vmem, size = 0x1000, scoped, tag = 'output window, operand 0, single buffered']
    #allocation3 [shape = 's32[1]{0}', space=sflag, size = 0x4, scoped, tag = 'scoped memory for tpu_custom_call.1']
    %7 = vsyncpa [#allocation3], 0
    // Predicated region
    $region2: #{tpu_custom_call.1} parent=1 // pred_check
      _
    $region3: #{tpu_custom_call.1} parent=1 // pred_check_branch
      %9 = sbr.rel (0) target = $region5
    $region4: #{tpu_custom_call.1} parent=1 // pred_region
      _
    $region5: #{tpu_custom_call.1} parent=1 // pred_fallthru
      _
    // Predicated region
    $region6: #{tpu_custom_call.1} parent=1 // pred_check
      _
    $region7: #{tpu_custom_call.1} parent=1 // pred_check_branch
      %11 = sbr.rel (0) target = $region9
    $region8: #{tpu_custom_call.1} parent=1 // pred_region
      _
    $region9: #{tpu_custom_call.1} parent=1 // pred_fallthru
      _
    %v12 = vld [vmem:[%s1] sm:$0x3]
    %v13 = vld [vmem:[%s0] sm:$0xff]
    %15 = vset.pattern.permute.xlu0 0
    %16 = vperm.xlu0 %15, %v13
    %v17 = vpop.permute.xlu0 %16
    %v19 = vperm.slane %v12, 0
    %v20 = vmul.f32 %v17, %v19
    %v21 = vperm.slane %v12, 1
    %v22 = vadd.f32 %v20, %v21
    %v23 = vand.u32 2147483647, %v22
    %vm24 = vcmp.le.f32.partialorder %v23, 0.7853982
    %vm25 = vcmp.lt.s32.totalorder %v22, 0
    %v26 = vand.u32 %v22, 2139095040
    %v27 = vshrl.u32 %v26, 23
    %v28 = vsub.s32 %v27, 127
    %v29 = vand.u32 2147483647, %v22
    %v30 = vand.u32 %v29, 8388607
    %v31 = vor.u32 %v30, 8388608
    %v32 = vsub.s32 0, %v31
    %v33 = vadd.s32 %v28, 1
    %vm34 = vcmp.gt.s32.totalorder %v33, 0
    %v35 = vsel %vm34, %v33, 0
    %v36 = vshrl.u32 %v35, 5
    %v37 = vand.u32 %v35, 31
    %v38 = vsub.s32 32, %v37
    %v39 = vshrl.u32 683565275, %v38
    %v40 = vshll.u32 683565275, %v37
    %v41 = vshrl.u32 2475754826, %v38
    %v42 = vor.u32 %v40, %v41
    %v43 = vshll.u32 2475754826, %v37
    %v44 = vshrl.u32 2131351028, %v38
    %v45 = vor.u32 %v43, %v44
    %v46 = vshll.u32 2131351028, %v37
    %v47 = vshrl.u32 2102212464, %v38
    %v48 = vor.u32 %v46, %v47
    %v49 = vshll.u32 2102212464, %v37
    %v50 = vshrl.u32 920167782, %v38
    %v51 = vor.u32 %v49, %v50
    %v52 = vshll.u32 920167782, %v37
    %v53 = vshrl.u32 1326507024, %v38
    %v54 = vor.u32 %v52, %v53
    %vm55 = vcmp.lt.s32.totalorder %v36, 1
    %vm56 = vcmp.lt.s32.totalorder %v36, 2
    %vm57 = vcmp.lt.s32.totalorder %v36, 3
    %vm58 = vcmp.lt.s32.totalorder %v36, 4
    %v59 = vsel %vm55, %v39, %v42
    %v60 = vsel %vm58, %v48, 2102212464
    %v61 = vsel %vm57, %v45, %v60
    %v62 = vsel %vm56, %v59, %v61
    %v63 = vsel %vm55, %v42, %v45
    %v64 = vsel %vm58, %v51, 920167782
    %v65 = vsel %vm57, %v48, %v64
    %v66 = vsel %vm56, %v63, %v65
    %v67 = vsel %vm55, %v45, %v48
    %v68 = vsel %vm58, %v54, 1326507024
    %v69 = vsel %vm57, %v51, %v68
    %v70 = vsel %vm56, %v67, %v69
    %v71 = vshll.u32 %v31, 8
    %v72 = vand.u32 %v71, 65535
    %v73 = vshrl.u32 %v71, 16
    %v74 = vand.u32 %v70, 65535
    %v75 = vshrl.u32 %v70, 16
    %v76 = vmul.u32 %v72, %v74
    %v77 = vmul.u32 %v72, %v75
    %v78 = vmul.u32 %v73, %v74
    %v79 = vmul.u32 %v73, %v75
    %v80 = vshll.u32 %v77, 16
    %v81 = vshrl.u32 %v77, 16
    %v82 = vshll.u32 %v78, 16
    %v83 = vshrl.u32 %v78, 16
    %vm84 = vc.u32 %v76, %v80
    %v85 = vsel %vm84, 1, 0
    %v86 = vadd.s32 %v76, %v80
    %v87 = vadd.s32 %v79, %v85
    %vm88 = vc.u32 %v86, %v82
    %v89 = vsel %vm88, 1, 0
    %v90 = vadd.s32 %v86, %v82
    %v91 = vadd.s32 %v87, %v89
    %v92 = vadd.s32 %v91, %v81
    %v93 = vadd.s32 %v92, %v83
    %v94 = vand.u32 %v71, 65535
    %v95 = vshrl.u32 %v71, 16
    %v96 = vand.u32 %v66, 65535
    %v97 = vshrl.u32 %v66, 16
    %v98 = vmul.u32 %v94, %v96
    %v99 = vmul.u32 %v94, %v97
    %v100 = vmul.u32 %v95, %v96
    %v101 = vmul.u32 %v95, %v97
    %v102 = vshll.u32 %v99, 16
    %v103 = vshrl.u32 %v99, 16
    %v104 = vshll.u32 %v100, 16
    %v105 = vshrl.u32 %v100, 16
    %vm106 = vc.u32 %v98, %v102
    %v107 = vsel %vm106, 1, 0
    %v108 = vadd.s32 %v98, %v102
    %v109 = vadd.s32 %v101, %v107
    %vm110 = vc.u32 %v108, %v104
    %v111 = vsel %vm110, 1, 0
    %v112 = vadd.s32 %v108, %v104
    %v113 = vadd.s32 %v109, %v111
    %v114 = vadd.s32 %v113, %v103
    %v115 = vadd.s32 %v114, %v105
    %v116 = vmul.u32 %v71, %v62
    %v117 = vadd.s32 %v93, %v112
    %vm118 = vc.u32 %v93, %v112
    %v119 = vadd.s32 %v115, 1
    %v120 = vsel %vm118, %v119, %v115
    %v121 = vadd.s32 %v116, %v120
    %v122 = vadd.s32 %v121, 536870912
    %v123 = vshrl.u32 %v122, 30
    %v124 = vshll.u32 %v123, 30
    %v125 = vsub.s32 %v121, %v124
    %vm126 = vcmp.lt.s32.totalorder %v125, 0
    %v127 = vsub.s32 0, %v125
    %v128 = vsel %vm126, %v127, %v125
    %v129 = vclz %v128
    %v130 = vsub.s32 %v129, 2
    %vm131 = vcmp.gt.s32.totalorder 0, %v130
    %v132 = vsel %vm131, 0, %v130
    %v133 = vsub.s32 32, %v132
    %v134 = vshll.u32 %v125, %v132
    %v135 = vshrl.u32 %v117, %v133
    %v136 = vor.u32 %v134, %v135
    %v137 = vsub.s32 4294967266, %v132
    %v138 = vadd.s32 %v137, 127
    %v139 = vshll.u32 %v138, 23
    %v140 = vor.u32 4788187, %v139
    %v141 = vand.u32 2147483647, %v140
    %v143 = vcvt.s32.f32 %v136
    %v144 = vmul.f32 %v143, %v141
    %v145 = vxor.u32 %v144, 2147483648
    %v146 = vsel %vm25, %v145, %v144
    %v147 = vsub.s32 4, %v123
    %v148 = vsel %vm25, %v147, %v123
    %v149 = vsel %vm24, %v22, %v146
    %v150 = vsel %vm24, 0, %v148
    %v151 = vmul.f32 %v149, %v149
    %v152 = vmul.f32 %v151, -0.001358992
    %v153 = vadd.f32 %v152, 0.041655596
    %v154 = vmul.f32 %v151, %v153
    %v155 = vadd.f32 %v154, -0.4999988
    %v156 = vmul.f32 %v151, %v155
    %v157 = vadd.f32 1.0, %v156
    %v158 = vmul.f32 %v149, %v149
    %v159 = vmul.f32 %v158, -0.00019511016
    %v160 = vadd.f32 %v159, 0.008332121
    %v161 = vmul.f32 %v158, %v160
    %v162 = vadd.f32 %v161, -0.16666654
    %v163 = vmul.f32 %v158, %v162
    %v164 = vadd.f32 %v163, 1.0
    %v165 = vmul.f32 %v164, %v149
    %vm166 = vweird.f32 %v22
    %v167 = vadd.s32 %v150, 3
    %v168 = vand.u32 %v167, 3
    %vm169 = vcmp.lt.s32.totalorder %v168, 2
    %vm170 = vcmp.eq.s32.totalorder %v168, 0
    %v171 = vxor.u32 %v165, 2147483648
    %v172 = vsel %vm170, %v157, %v171
    %vm173 = vcmp.eq.s32.totalorder %v168, 2
    %v174 = vxor.u32 %v157, 2147483648
    %v175 = vsel %vm173, %v174, %v165
    %v176 = vsel %vm169, %v172, %v175
    %v177 = vsel %vm166, nan, %v176
    %178 = vst [vmem:[#allocation2] sm:$0xff] %v177
    // Predicated region
    $region10: #{tpu_custom_call.1} parent=1 // pred_check
      _
    $region11: #{tpu_custom_call.1} parent=1 // pred_check_branch
      %180 = sbr.rel (0) target = $region13
    $region12: #{tpu_custom_call.1} parent=1 // pred_region
      %182 = vsyncadd [#allocation3], 0
      %s184 = sshll.u32 [#allocation2], 4
      %s185 = int_to_ptr.vmem [resolvable:$true] %s184
      %s186 = sshll.u32 %s2, 4
      %s187 = int_to_ptr.hbm [resolvable:$true] %s186
      %189 = dma.vmem_to_hbm [thread:$0]  %s185, 128, %s187, [#allocation3]
    $region13: #{tpu_custom_call.1} parent=1 // pred_fallthru
      _
    // Predicated region
    $region14: #{tpu_custom_call.1} parent=1 // pred_check
      _
    $region15: #{tpu_custom_call.1} parent=1 // pred_check_branch
      %191 = sbr.rel (0) target = $region17
    $region16: #{tpu_custom_call.1} parent=1 // pred_region
      %193 = dma.done [#allocation3], 128
    $region17: #{tpu_custom_call.1} parent=1 // pred_fallthru
      _
    %194 = vsyncpa [#allocation3], 1

</llo_original>
